<compile_context>
chip_gen: v5e
topology: v5e:2x2
jax: 0.10.0
libtpu: 0.0.40
codegen_flags: <defaults>
</compile_context>

<pallas_src>
import functools

import jax
import jax.numpy as jnp
from jax.experimental import pallas as pl
from jax.experimental.pallas import tpu as pltpu

BN_EPS = 1e-5
LANE = 128


def _vmem_spec():
    # whole-array block resident in VMEM (shapes here are tiny)
    return pl.BlockSpec(memory_space=pltpu.MemorySpace.VMEM)


def _round_up(v, m):
    return ((v + m - 1) // m) * m


def _pad2(arr, rows, cols):
    r, c = arr.shape
    return jnp.pad(arr, ((0, rows - r), (0, cols - c)))


# ---------------------------------------------------------------------------
# Fused Pallas kernel: all GCN layers + BN + ReLU + classifier in one body.
# ---------------------------------------------------------------------------
def fused_forward_kernel(a_ref, x_ref, *rest, layer_num, use_bn, last_activation):
    """rest = [w_0, ..., w_{L-1}, wc, vecs, o_ref].

    a_ref : (N, N)                      A_hat (already in matmul dtype)
    x_ref : (N, in_pad)                 node features (lane-padded, matmul dtype)
    w_i   : (d_in_pad_i, d_out_pad_i)   GCNConv weights (per-dim padded)
    wc    : (hidden_pad, out_pad)       classifier weight
    vecs  : (n_vec, vmax) f32           rows per layer: [gamma_i, beta_i] if
                                        use_bn else [b_i]; last row = bc
    o_ref : (N, out_pad)  f32
    """
    w_refs = rest[:layer_num]
    wc_ref = rest[layer_num]
    vec_ref = rest[layer_num + 1]
    o_ref = rest[layer_num + 2]

    a = a_ref[...]            # A_hat loaded once, reused by every layer
    h = x_ref[...]
    vecs = vec_ref[...]       # all small per-layer vectors: one load
    rows_per_layer = 2 if use_bn else 1

    for i in range(layer_num):                    # static unroll; h stays on-chip
        w = w_refs[i][...]
        d_out = w.shape[1]

        # GCNConv (PyG order): linear transform, then propagate.
        t = jnp.dot(h, w, preferred_element_type=jnp.float32)
        y = jnp.dot(a, t.astype(a.dtype), preferred_element_type=jnp.float32)

        if use_bn:
            # GCNConv bias is a per-column constant -> exactly cancelled by
            # the BN mean subtraction, so it is skipped entirely.
            gamma = vecs[rows_per_layer * i: rows_per_layer * i + 1, :d_out]
            beta = vecs[rows_per_layer * i + 1: rows_per_layer * i + 2, :d_out]
            # BatchNorm1d over the node axis, biased batch stats, two-pass
            # variance (numerically safe); rsqrt lands on the EUP slot.
            mean = jnp.mean(y, axis=0, keepdims=True)
            var = jnp.mean((y - mean) ** 2, axis=0, keepdims=True)
            y = (y - mean) * jax.lax.rsqrt(var + BN_EPS) * gamma + beta
        else:
            y = y + vecs[i: i + 1, :d_out]        # GCNConv bias

        if (i < layer_num - 1) or last_activation:
            y = jnp.maximum(y, 0.0)

        # TODO(synk): training-mode dropout(p=0.5) would use
        # pltpu.prng_random_bits here; forward here uses eval semantics.
        h = y.astype(a.dtype)                     # back to matmul dtype on-chip

    # Classifier: h @ Wc + bc
    wc = wc_ref[...]
    out_pad = wc.shape[1]
    bc = vecs[-1:, :out_pad]
    o_ref[...] = (jnp.dot(h, wc, preferred_element_type=jnp.float32)
                  + bc).astype(o_ref.dtype)


# ---------------------------------------------------------------------------
# Model glue: parameters, adjacency normalization, forward wrapper
# ---------------------------------------------------------------------------
def init_params(key, input_dim, hidden, output_dim, layer_num):
    params = {"convs": [], "bns": []}
    dims = [input_dim] + [hidden] * layer_num
    for i in range(layer_num):
        key, k = jax.random.split(key)
        fan_in, fan_out = dims[i], dims[i + 1]
        limit = (6.0 / (fan_in + fan_out)) ** 0.5           # glorot (PyG GCNConv)
        w = jax.random.uniform(k, (fan_in, fan_out), jnp.float32, -limit, limit)
        b = jnp.zeros((1, fan_out), jnp.float32)
        params["convs"].append((w, b))
        params["bns"].append(
            (jnp.ones((1, fan_out), jnp.float32), jnp.zeros((1, fan_out), jnp.float32))
        )
    key, k1, k2 = jax.random.split(key, 3)
    limit = 1.0 / (hidden ** 0.5)                            # torch.nn.Linear init
    wc = jax.random.uniform(k1, (hidden, output_dim), jnp.float32, -limit, limit)
    bc = jax.random.uniform(k2, (1, output_dim), jnp.float32, -limit, limit)
    params["classifier"] = (wc, bc)
    return params


def build_normalized_adjacency(edge_index, num_nodes):
    """A_hat = D^-1/2 (A + I) D^-1/2, matching PyG gcn_norm with self-loops.

    Uses scatter-set (not add) so duplicate edges in edge_index are deduped.
    """
    src, dst = edge_index[0], edge_index[1]
    a = jnp.zeros((num_nodes, num_nodes), jnp.float32).at[dst, src].set(1.0)
    a = jnp.maximum(a, jnp.eye(num_nodes, dtype=jnp.float32))   # add self-loops
    deg = jnp.sum(a, axis=1)
    dinv = jax.lax.rsqrt(deg)
    return a * dinv[:, None] * dinv[None, :]


def graphmae_forward(params, x, a_hat, *, use_bn=True, last_activation=False,
                     matmul_dtype=jnp.bfloat16):
    """Single fused pallas_call for the whole forward pass."""
    n, input_dim = x.shape
    layer_num = len(params["convs"])
    output_dim = params["classifier"][0].shape[1]

    # Per-dimension lane padding (128-multiple) for every matmul operand.
    dims = [input_dim] + [w.shape[1] for (w, _) in params["convs"]]
    pads = [_round_up(d, LANE) for d in dims]
    out_pad = _round_up(output_dim, LANE)
    vmax = max(pads[-1], out_pad)

    # MXU operands are cast to `matmul_dtype` here (before the pallas_call)
    # so the DMA moves the narrow dtype and no f32 copy of A_hat is held.
    inputs = [a_hat.astype(matmul_dtype),
              _pad2(x, n, pads[0]).astype(matmul_dtype)]
    for i, (w, _) in enumerate(params["convs"]):
        inputs.append(_pad2(w, pads[i], pads[i + 1]).astype(matmul_dtype))
    wc, bc = params["classifier"]
    inputs.append(_pad2(wc, pads[-1], out_pad).astype(matmul_dtype))

    # Pack all small per-layer vectors into one stacked f32 array (one DMA).
    vec_rows = []
    for i in range(layer_num):
        if use_bn:
            gamma, beta = params["bns"][i]
            vec_rows += [_pad2(gamma, 1, vmax), _pad2(beta, 1, vmax)]
        else:
            vec_rows.append(_pad2(params["convs"][i][1], 1, vmax))
    vec_rows.append(_pad2(bc, 1, vmax))
    inputs.append(jnp.concatenate(vec_rows, axis=0))          # (n_vec, vmax) f32

    kern = functools.partial(
        fused_forward_kernel,
        layer_num=layer_num, use_bn=use_bn, last_activation=last_activation)

    # Explicit VMEM budget with headroom (v5e default scoped limit is 16 MiB,
    # v6e/v7x 32 MiB); capped at v7x's 64 MiB physical per-TC VMEM.
    in_bytes = sum(int(a.size) * a.dtype.itemsize for a in inputs)
    out_bytes = n * out_pad * 4
    vmem_limit = int(min(64 * 2 ** 20, max(32 * 2 ** 20, 4 * (in_bytes + out_bytes))))

    out_padded = pl.pallas_call(
        kern,
        out_shape=jax.ShapeDtypeStruct((n, out_pad), jnp.float32),
        in_specs=[_vmem_spec()] * len(inputs),
        out_specs=_vmem_spec(),
        compiler_params=pltpu.CompilerParams(vmem_limit_bytes=vmem_limit),
    )(*inputs)

    return out_padded[:, :output_dim]


def graphmae_forward_ref(params, x, a_hat, *, use_bn=True, last_activation=False):
    """Pure-JAX f32 reference for correctness checking."""
    h = x
    layer_num = len(params["convs"])
    for i in range(layer_num):
        w, b = params["convs"][i]
        gamma, beta = params["bns"][i]
        y = a_hat @ (h @ w) + b
        if use_bn:
            mean = jnp.mean(y, axis=0, keepdims=True)
            var = jnp.mean((y - mean) ** 2, axis=0, keepdims=True)
            y = (y - mean) * jax.lax.rsqrt(var + BN_EPS) * gamma + beta
        if (i < layer_num - 1) or last_activation:
            y = jnp.maximum(y, 0.0)
        h = y
    wc, bc = params["classifier"]
    return h @ wc + bc


# ---------------------------------------------------------------------------
if __name__ == "__main__":
    N, INPUT_DIM, HIDDEN, OUTPUT_DIM, LAYER_NUM = 32, 16, 32, 8, 2

    key = jax.random.PRNGKey(0)
    kx, kp = jax.random.split(key)

    # Deterministic node features.
    x = jax.random.normal(kx, (N, INPUT_DIM), jnp.float32)

    # Deterministic graph: undirected ring (both edge directions listed).
    idx = jnp.arange(N)
    src = jnp.concatenate([idx, (idx + 1) % N])
    dst = jnp.concatenate([(idx + 1) % N, idx])
    edge_index = jnp.stack([src, dst], axis=0)          # (2, 2N)
    a_hat = build_normalized_adjacency(edge_index, N)   # (N, N)

    params = init_params(kp, INPUT_DIM, HIDDEN, OUTPUT_DIM, LAYER_NUM)

    out = graphmae_forward(params, x, a_hat, use_bn=True, last_activation=False)
    jax.block_until_ready(out)

    assert out.shape == (N, OUTPUT_DIM), out.shape
    assert out.dtype == jnp.float32

    # Correctness check against a pure-JAX f32 reference.  The tolerance
    # budgets specifically for the default bf16 MXU operands (native MXU
    # dtype on v5e/v6e/v7x); pass matmul_dtype=jnp.float32 for ~1e-5 match.
    ref = graphmae_forward_ref(params, x, a_hat, use_bn=True, last_activation=False)
    max_err = float(jnp.max(jnp.abs(out - ref)))
    assert max_err < 5e-2, f"max abs error {max_err}"

    print("KERNEL_OK")
</pallas_src>

<mosaic_0001>
module attributes {stable_mosaic.version = 11 : i64} {
  func.func @fused_forward_kernel(%arg0: memref<32x32xbf16, #tpu.memory_space<vmem>>, %arg1: memref<32x128xbf16, #tpu.memory_space<vmem>>, %arg2: memref<128x128xbf16, #tpu.memory_space<vmem>>, %arg3: memref<128x128xbf16, #tpu.memory_space<vmem>>, %arg4: memref<128x128xbf16, #tpu.memory_space<vmem>>, %arg5: memref<5x128xf32, #tpu.memory_space<vmem>>, %arg6: memref<32x128xf32, #tpu.memory_space<vmem>>) attributes {dimension_semantics = [], scalar_prefetch = 0 : i64, scratch_operands = 0 : i64, tpu.core_type = #tpu.core_type<tc>} {
    %c0 = arith.constant 0 : index
    %c0_0 = arith.constant 0 : index
    %0 = vector.load %arg0[%c0, %c0_0] : memref<32x32xbf16, #tpu.memory_space<vmem>>, vector<32x32xbf16>
    %c0_1 = arith.constant 0 : index
    %c0_2 = arith.constant 0 : index
    %1 = vector.load %arg1[%c0_1, %c0_2] : memref<32x128xbf16, #tpu.memory_space<vmem>>, vector<32x128xbf16>
    %c0_3 = arith.constant 0 : index
    %c0_4 = arith.constant 0 : index
    %2 = vector.load %arg5[%c0_3, %c0_4] : memref<5x128xf32, #tpu.memory_space<vmem>>, vector<5x128xf32>
    %c0_5 = arith.constant 0 : index
    %c0_6 = arith.constant 0 : index
    %3 = vector.load %arg2[%c0_5, %c0_6] : memref<128x128xbf16, #tpu.memory_space<vmem>>, vector<128x128xbf16>
    %cst = arith.constant dense<0.000000e+00> : vector<32x128xf32>
    %4 = tpu.matmul %1, %3, %cst {dimension_numbers = #tpu.dot_dimension_numbers<[1], [0], [0], [1], [0, 0, 1, 1], [], []>} : vector<32x128xbf16>, vector<128x128xbf16>, vector<32x128xf32> -> vector<32x128xf32>
    %5 = arith.truncf %4 : vector<32x128xf32> to vector<32x128xbf16>
    %cst_7 = arith.constant dense<0.000000e+00> : vector<32x128xf32>
    %6 = tpu.matmul %0, %5, %cst_7 {dimension_numbers = #tpu.dot_dimension_numbers<[1], [0], [0], [1], [0, 0, 1, 1], [], []>} : vector<32x32xbf16>, vector<32x128xbf16>, vector<32x128xf32> -> vector<32x128xf32>
    %7 = vector.extract_strided_slice %2 {offsets = [0, 0], sizes = [1, 128], strides = [1, 1]} : vector<5x128xf32> to vector<1x128xf32>
    %8 = vector.extract_strided_slice %2 {offsets = [1, 0], sizes = [1, 128], strides = [1, 1]} : vector<5x128xf32> to vector<1x128xf32>
    %cst_8 = arith.constant dense<0.000000e+00> : vector<128xf32>
    %9 = vector.multi_reduction <add>, %6, %cst_8 [0] : vector<32x128xf32> to vector<128xf32>
    %10 = vector.shape_cast %9 : vector<128xf32> to vector<1x128xf32>
    %cst_9 = arith.constant 3.200000e+01 : f32
    %11 = vector.broadcast %cst_9 : f32 to vector<1x128xf32>
    %12 = arith.divf %10, %11 : vector<1x128xf32>
    %13 = vector.broadcast %12 : vector<1x128xf32> to vector<32x128xf32>
    %14 = arith.subf %6, %13 : vector<32x128xf32>
    %15 = arith.mulf %14, %14 : vector<32x128xf32>
    %cst_10 = arith.constant dense<0.000000e+00> : vector<128xf32>
    %16 = vector.multi_reduction <add>, %15, %cst_10 [0] : vector<32x128xf32> to vector<128xf32>
    %17 = vector.shape_cast %16 : vector<128xf32> to vector<1x128xf32>
    %cst_11 = arith.constant 3.200000e+01 : f32
    %18 = vector.broadcast %cst_11 : f32 to vector<1x128xf32>
    %19 = arith.divf %17, %18 : vector<1x128xf32>
    %20 = vector.broadcast %12 : vector<1x128xf32> to vector<32x128xf32>
    %21 = arith.subf %6, %20 : vector<32x128xf32>
    %cst_12 = arith.constant 9.99999974E-6 : f32
    %22 = vector.broadcast %cst_12 : f32 to vector<1x128xf32>
    %23 = arith.addf %19, %22 : vector<1x128xf32>
    %24 = math.rsqrt %23 : vector<1x128xf32>
    %25 = vector.broadcast %24 : vector<1x128xf32> to vector<32x128xf32>
    %26 = arith.mulf %21, %25 : vector<32x128xf32>
    %27 = vector.broadcast %7 : vector<1x128xf32> to vector<32x128xf32>
    %28 = arith.mulf %26, %27 : vector<32x128xf32>
    %29 = vector.broadcast %8 : vector<1x128xf32> to vector<32x128xf32>
    %30 = arith.addf %28, %29 : vector<32x128xf32>
    %cst_13 = arith.constant 0.000000e+00 : f32
    %31 = vector.broadcast %cst_13 : f32 to vector<32x128xf32>
    %32 = arith.maximumf %30, %31 : vector<32x128xf32>
    %33 = arith.truncf %32 : vector<32x128xf32> to vector<32x128xbf16>
    %c0_14 = arith.constant 0 : index
    %c0_15 = arith.constant 0 : index
    %34 = vector.load %arg3[%c0_14, %c0_15] : memref<128x128xbf16, #tpu.memory_space<vmem>>, vector<128x128xbf16>
    %cst_16 = arith.constant dense<0.000000e+00> : vector<32x128xf32>
    %35 = tpu.matmul %33, %34, %cst_16 {dimension_numbers = #tpu.dot_dimension_numbers<[1], [0], [0], [1], [0, 0, 1, 1], [], []>} : vector<32x128xbf16>, vector<128x128xbf16>, vector<32x128xf32> -> vector<32x128xf32>
    %36 = arith.truncf %35 : vector<32x128xf32> to vector<32x128xbf16>
    %cst_17 = arith.constant dense<0.000000e+00> : vector<32x128xf32>
    %37 = tpu.matmul %0, %36, %cst_17 {dimension_numbers = #tpu.dot_dimension_numbers<[1], [0], [0], [1], [0, 0, 1, 1], [], []>} : vector<32x32xbf16>, vector<32x128xbf16>, vector<32x128xf32> -> vector<32x128xf32>
    %38 = vector.extract_strided_slice %2 {offsets = [2, 0], sizes = [1, 128], strides = [1, 1]} : vector<5x128xf32> to vector<1x128xf32>
    %39 = vector.extract_strided_slice %2 {offsets = [3, 0], sizes = [1, 128], strides = [1, 1]} : vector<5x128xf32> to vector<1x128xf32>
    %cst_18 = arith.constant dense<0.000000e+00> : vector<128xf32>
    %40 = vector.multi_reduction <add>, %37, %cst_18 [0] : vector<32x128xf32> to vector<128xf32>
    %41 = vector.shape_cast %40 : vector<128xf32> to vector<1x128xf32>
    %cst_19 = arith.constant 3.200000e+01 : f32
    %42 = vector.broadcast %cst_19 : f32 to vector<1x128xf32>
    %43 = arith.divf %41, %42 : vector<1x128xf32>
    %44 = vector.broadcast %43 : vector<1x128xf32> to vector<32x128xf32>
    %45 = arith.subf %37, %44 : vector<32x128xf32>
    %46 = arith.mulf %45, %45 : vector<32x128xf32>
    %cst_20 = arith.constant dense<0.000000e+00> : vector<128xf32>
    %47 = vector.multi_reduction <add>, %46, %cst_20 [0] : vector<32x128xf32> to vector<128xf32>
    %48 = vector.shape_cast %47 : vector<128xf32> to vector<1x128xf32>
    %cst_21 = arith.constant 3.200000e+01 : f32
    %49 = vector.broadcast %cst_21 : f32 to vector<1x128xf32>
    %50 = arith.divf %48, %49 : vector<1x128xf32>
    %51 = vector.broadcast %43 : vector<1x128xf32> to vector<32x128xf32>
    %52 = arith.subf %37, %51 : vector<32x128xf32>
    %cst_22 = arith.constant 9.99999974E-6 : f32
    %53 = vector.broadcast %cst_22 : f32 to vector<1x128xf32>
    %54 = arith.addf %50, %53 : vector<1x128xf32>
    %55 = math.rsqrt %54 : vector<1x128xf32>
    %56 = vector.broadcast %55 : vector<1x128xf32> to vector<32x128xf32>
    %57 = arith.mulf %52, %56 : vector<32x128xf32>
    %58 = vector.broadcast %38 : vector<1x128xf32> to vector<32x128xf32>
    %59 = arith.mulf %57, %58 : vector<32x128xf32>
    %60 = vector.broadcast %39 : vector<1x128xf32> to vector<32x128xf32>
    %61 = arith.addf %59, %60 : vector<32x128xf32>
    %62 = arith.truncf %61 : vector<32x128xf32> to vector<32x128xbf16>
    %c0_23 = arith.constant 0 : index
    %c0_24 = arith.constant 0 : index
    %63 = vector.load %arg4[%c0_23, %c0_24] : memref<128x128xbf16, #tpu.memory_space<vmem>>, vector<128x128xbf16>
    %64 = vector.extract_strided_slice %2 {offsets = [4, 0], sizes = [1, 128], strides = [1, 1]} : vector<5x128xf32> to vector<1x128xf32>
    %cst_25 = arith.constant dense<0.000000e+00> : vector<32x128xf32>
    %65 = tpu.matmul %62, %63, %cst_25 {dimension_numbers = #tpu.dot_dimension_numbers<[1], [0], [0], [1], [0, 0, 1, 1], [], []>} : vector<32x128xbf16>, vector<128x128xbf16>, vector<32x128xf32> -> vector<32x128xf32>
    %66 = vector.broadcast %64 : vector<1x128xf32> to vector<32x128xf32>
    %67 = arith.addf %65, %66 : vector<32x128xf32>
    %c0_26 = arith.constant 0 : index
    %c0_27 = arith.constant 0 : index
    %68 = vector.load %arg6[%c0_26, %c0_27] : memref<32x128xf32, #tpu.memory_space<vmem>>, vector<32x128xf32>
    tpu.vector_store %arg6[%c0_26, %c0_27], %67 {strides = array<i32>} : memref<32x128xf32, #tpu.memory_space<vmem>>, vector<32x128xf32>,
    return
  }
}

</mosaic_0001>

<llo_original>
// kernel: tpu_custom_call.1
$region0: #{tpu_custom_call.1}
  #allocation0 [shape = 'u32[]', space=smem, size = 0x4, offset = 0x4, fixed_abs, tag = 'smem constant byte address 0x4 - core index']
  #allocation1 [shape = 'u32[72,128]{1,0:T(1,128)}', space=vmem, size = 0x9000, scoped, tag = 'internal scratch']
  %s0 = inlined_call_operand.hbm [shape: bf16[32,32], index: 0, kind: input, shape index: {}]
  %s1 = inlined_call_operand.hbm [shape: bf16[32,128], index: 1, kind: input, shape index: {}]
  %s2 = inlined_call_operand.hbm [shape: bf16[128,128], index: 2, kind: input, shape index: {}]
  %s3 = inlined_call_operand.hbm [shape: bf16[128,128], index: 3, kind: input, shape index: {}]
  %s4 = inlined_call_operand.hbm [shape: bf16[128,128], index: 4, kind: input, shape index: {}]
  %s5 = inlined_call_operand.hbm [shape: f32[5,128], index: 5, kind: input, shape index: {}]
  %s6 = inlined_call_operand.hbm [shape: f32[32,128], index: 6, kind: output, shape index: {}]
  %s7 = sld [smem:[#allocation0]]
  $region58: #{tpu_custom_call.1} parent=0
    _
  %s9 = ssub.s32 1, %s7
  %s10 = scalar_select 0, %s9, %s7
  $region1: #{tpu_custom_call.1} parent=0
    #allocation2 [shape = 'u8[8192]{0}', space=vmem, size = 0x2000, scoped, tag = 'input window, operand 0, single buffered']
    #allocation3 [shape = 's32[1]{0}', space=sflag, size = 0x4, scoped, tag = 'scoped memory for tpu_custom_call.1']
    #allocation4 [shape = 's32[1]{0}', space=sflag, size = 0x4, scoped, tag = 'scoped memory for tpu_custom_call.1']
    #allocation5 [shape = 'u8[8192]{0}', space=vmem, size = 0x2000, scoped, tag = 'input window, operand 1, single buffered']
    #allocation6 [shape = 's32[1]{0}', space=sflag, size = 0x4, scoped, tag = 'scoped memory for tpu_custom_call.1']
    #allocation7 [shape = 'u8[32768]{0}', space=vmem, size = 0x8000, scoped, tag = 'input window, operand 2, single buffered']
    #allocation8 [shape = 'u8[32768]{0}', space=vmem, size = 0x8000, scoped, tag = 'input window, operand 3, single buffered']
    #allocation9 [shape = 's32[1]{0}', space=sflag, size = 0x4, scoped, tag = 'scoped memory for tpu_custom_call.1']
    #allocation10 [shape = 'u8[32768]{0}', space=vmem, size = 0x8000, scoped, tag = 'input window, operand 4, single buffered']
    #allocation11 [shape = 'u8[4096]{0}', space=vmem, size = 0x1000, scoped, tag = 'input window, operand 5, single buffered']
    #allocation12 [shape = 's32[1]{0}', space=sflag, size = 0x4, scoped, tag = 'scoped memory for tpu_custom_call.1']
    #allocation13 [shape = 'u8[16384]{0}', space=vmem, size = 0x4000, scoped, tag = 'output window, operand 0, single buffered']
    %11 = vsyncpa [#allocation3], 0
    %12 = vsyncpa [#allocation6], 0
    %13 = vsyncpa [#allocation9], 0
    %14 = vsyncpa [#allocation12], 0
    %15 = vsyncpa [#allocation4], 0
    // Predicated region
    $region2: #{tpu_custom_call.1} parent=1 // pred_check
      _
    $region3: #{tpu_custom_call.1} parent=1 // pred_check_branch
      %17 = sbr.rel (0) target = $region5
    $region4: #{tpu_custom_call.1} parent=1 // pred_region
      %19 = vsyncadd [#allocation3], 0
      %s20 = sshll.u32 %s0, 4
      %s21 = int_to_ptr.hbm [resolvable:$true] %s20
      %s22 = sshll.u32 [#allocation2], 4
      %s23 = int_to_ptr.vmem [resolvable:$true] %s22
      %28 = dma.hbm_to_vmem [thread:$0]  %s21, 256, %s23, [#allocation3], 64, 64, 4
    $region5: #{tpu_custom_call.1} parent=1 // pred_fallthru
      _
    // Predicated region
    $region6: #{tpu_custom_call.1} parent=1 // pred_check
      _
    $region7: #{tpu_custom_call.1} parent=1 // pred_check_branch
      %30 = sbr.rel (0) target = $region9
    $region8: #{tpu_custom_call.1} parent=1 // pred_region
      %32 = vsyncadd [#allocation6], 0
      %s33 = sshll.u32 %s1, 4
      %s34 = int_to_ptr.hbm [resolvable:$true] %s33
      %s35 = sshll.u32 [#allocation5], 4
      %s36 = int_to_ptr.vmem [resolvable:$true] %s35
      %41 = dma.hbm_to_vmem [thread:$0]  %s34, 256, %s36, [#allocation6], 64, 64, 4
    $region9: #{tpu_custom_call.1} parent=1 // pred_fallthru
      _
    // Predicated region
    $region10: #{tpu_custom_call.1} parent=1 // pred_check
      _
    $region11: #{tpu_custom_call.1} parent=1 // pred_check_branch
      %43 = sbr.rel (0) target = $region13
    $region12: #{tpu_custom_call.1} parent=1 // pred_region
      %45 = vsyncadd [#allocation6], 0
      %s46 = sshll.u32 %s2, 4
      %s47 = int_to_ptr.hbm [resolvable:$true] %s46
      %s48 = sshll.u32 [#allocation7], 4
      %s49 = int_to_ptr.vmem [resolvable:$true] %s48
      %54 = dma.hbm_to_vmem [thread:$0]  %s47, 1024, %s49, [#allocation6], 64, 64, 4
    $region13: #{tpu_custom_call.1} parent=1 // pred_fallthru
      _
    // Predicated region
    $region14: #{tpu_custom_call.1} parent=1 // pred_check
      _
    $region15: #{tpu_custom_call.1} parent=1 // pred_check_branch
      %56 = sbr.rel (0) target = $region17
    $region16: #{tpu_custom_call.1} parent=1 // pred_region
      %58 = vsyncadd [#allocation9], 0
      %s59 = sshll.u32 %s3, 4
      %s60 = int_to_ptr.hbm [resolvable:$true] %s59
      %s61 = sshll.u32 [#allocation8], 4
      %s62 = int_to_ptr.vmem [resolvable:$true] %s61
      %67 = dma.hbm_to_vmem [thread:$0]  %s60, 1024, %s62, [#allocation9], 64, 64, 4
    $region17: #{tpu_custom_call.1} parent=1 // pred_fallthru
      _
    // Predicated region
    $region18: #{tpu_custom_call.1} parent=1 // pred_check
      _
    $region19: #{tpu_custom_call.1} parent=1 // pred_check_branch
      %69 = sbr.rel (0) target = $region21
    $region20: #{tpu_custom_call.1} parent=1 // pred_region
      %71 = vsyncadd [#allocation9], 0
      %s72 = sshll.u32 %s4, 4
      %s73 = int_to_ptr.hbm [resolvable:$true] %s72
      %s74 = sshll.u32 [#allocation10], 4
      %s75 = int_to_ptr.vmem [resolvable:$true] %s74
      %80 = dma.hbm_to_vmem [thread:$0]  %s73, 1024, %s75, [#allocation9], 64, 64, 4
    $region21: #{tpu_custom_call.1} parent=1 // pred_fallthru
      _
    // Predicated region
    $region22: #{tpu_custom_call.1} parent=1 // pred_check
      _
    $region23: #{tpu_custom_call.1} parent=1 // pred_check_branch
      %82 = sbr.rel (0) target = $region25
    $region24: #{tpu_custom_call.1} parent=1 // pred_region
      %84 = vsyncadd [#allocation12], 0
      %s86 = sshll.u32 %s5, 4
      %s87 = int_to_ptr.hbm [resolvable:$true] %s86
      %s88 = sshll.u32 [#allocation11], 4
      %s89 = int_to_ptr.vmem [resolvable:$true] %s88
      %91 = dma.hbm_to_vmem [thread:$0]  %s87, 128, %s89, [#allocation12]
    $region25: #{tpu_custom_call.1} parent=1 // pred_fallthru
      _
    // Predicated region
    $region26: #{tpu_custom_call.1} parent=1 // pred_check
      _
    $region27: #{tpu_custom_call.1} parent=1 // pred_check_branch
      %93 = sbr.rel (0) target = $region29
    $region28: #{tpu_custom_call.1} parent=1 // pred_region
      %95 = dma.done [#allocation3], 256
    $region29: #{tpu_custom_call.1} parent=1 // pred_fallthru
      _
    // Predicated region
    $region30: #{tpu_custom_call.1} parent=1 // pred_check
      _
    $region31: #{tpu_custom_call.1} parent=1 // pred_check_branch
      %97 = sbr.rel (0) target = $region33
    $region32: #{tpu_custom_call.1} parent=1 // pred_region
      %99 = dma.done [#allocation6], 256
    $region33: #{tpu_custom_call.1} parent=1 // pred_fallthru
      _
    // Predicated region
    $region34: #{tpu_custom_call.1} parent=1 // pred_check
      _
    $region35: #{tpu_custom_call.1} parent=1 // pred_check_branch
      %101 = sbr.rel (0) target = $region37
    $region36: #{tpu_custom_call.1} parent=1 // pred_region
      %103 = dma.done [#allocation6], 1024
    $region37: #{tpu_custom_call.1} parent=1 // pred_fallthru
      _
    // Predicated region
    $region38: #{tpu_custom_call.1} parent=1 // pred_check
      _
    $region39: #{tpu_custom_call.1} parent=1 // pred_check_branch
      %105 = sbr.rel (0) target = $region41
    $region40: #{tpu_custom_call.1} parent=1 // pred_region
      %107 = dma.done [#allocation9], 1024
    $region41: #{tpu_custom_call.1} parent=1 // pred_fallthru
      _
    // Predicated region
    $region42: #{tpu_custom_call.1} parent=1 // pred_check
      _
    $region43: #{tpu_custom_call.1} parent=1 // pred_check_branch
      %109 = sbr.rel (0) target = $region45
    $region44: #{tpu_custom_call.1} parent=1 // pred_region
      %111 = dma.done [#allocation9], 1024
    $region45: #{tpu_custom_call.1} parent=1 // pred_fallthru
      _
    // Predicated region
    $region46: #{tpu_custom_call.1} parent=1 // pred_check
      _
    $region47: #{tpu_custom_call.1} parent=1 // pred_check_branch
      %113 = sbr.rel (0) target = $region49
    $region48: #{tpu_custom_call.1} parent=1 // pred_region
      %115 = dma.done [#allocation12], 128
    $region49: #{tpu_custom_call.1} parent=1 // pred_fallthru
      _
    %v117 = vld [vmem:[#allocation2] sm:$0xf]
    %v118 = vld [vmem:[#allocation2 + $0x4] sm:$0xf]
    %v119 = vld [vmem:[#allocation2 + $0x8] sm:$0xf]
    %v120 = vld [vmem:[#allocation2 + $0xc] sm:$0xf]
    %v121 = vld [vmem:[#allocation5] sm:$0xf]
    %v122 = vld [vmem:[#allocation5 + $0x4] sm:$0xf]
    %v123 = vld [vmem:[#allocation5 + $0x8] sm:$0xf]
    %v124 = vld [vmem:[#allocation5 + $0xc] sm:$0xf]
    %v125 = vld [vmem:[#allocation11] sm:$0x1f]
    %v126 = vld [vmem:[#allocation7] sm:$0xf]
    %v127 = vld [vmem:[#allocation7 + $0x4] sm:$0xf]
    %v128 = vld [vmem:[#allocation7 + $0x8] sm:$0xf]
    %v129 = vld [vmem:[#allocation7 + $0xc] sm:$0xf]
    %v130 = vld [vmem:[#allocation7 + $0x10] sm:$0xf]
    %v131 = vld [vmem:[#allocation7 + $0x14] sm:$0xf]
    %v132 = vld [vmem:[#allocation7 + $0x18] sm:$0xf]
    %v133 = vld [vmem:[#allocation7 + $0x1c] sm:$0xf]
    %v134 = vld [vmem:[#allocation7 + $0x20] sm:$0xf]
    %v135 = vld [vmem:[#allocation7 + $0x24] sm:$0xf]
    %v136 = vld [vmem:[#allocation7 + $0x28] sm:$0xf]
    %v137 = vld [vmem:[#allocation7 + $0x2c] sm:$0xf]
    %v138 = vld [vmem:[#allocation7 + $0x30] sm:$0xf]
    %v139 = vld [vmem:[#allocation7 + $0x34] sm:$0xf]
    %v140 = vld [vmem:[#allocation7 + $0x38] sm:$0xf]
    %v141 = vld [vmem:[#allocation7 + $0x3c] sm:$0xf]
    %v146 = vunpack.c.l.b16 %v121
    %v147 = vunpack.c.l.b16 %v122
    %v148 = vunpack.c.l.b16 %v123
    %v149 = vunpack.c.l.b16 %v124
    %v150 = vpack.c.b16 %v147, %v146
    %v151 = vpack.c.b16 %v149, %v148
    %v170 = vunpack.c.l.b16 %v126
    %v171 = vunpack.c.l.b16 %v127
    %v172 = vunpack.c.l.b16 %v128
    %v173 = vunpack.c.l.b16 %v129
    %v174 = vunpack.c.l.b16 %v130
    %v175 = vunpack.c.l.b16 %v131
    %v176 = vunpack.c.l.b16 %v132
    %v177 = vunpack.c.l.b16 %v133
    %v178 = vunpack.c.l.b16 %v134
    %v179 = vunpack.c.l.b16 %v135
    %v180 = vunpack.c.l.b16 %v136
    %v181 = vunpack.c.l.b16 %v137
    %v182 = vunpack.c.l.b16 %v138
    %v183 = vunpack.c.l.b16 %v139
    %v184 = vunpack.c.l.b16 %v140
    %v185 = vunpack.c.l.b16 %v141
    %v186 = vpack.c.b16 %v171, %v170
    %v187 = vpack.c.b16 %v173, %v172
    %v188 = vpack.c.b16 %v175, %v174
    %v189 = vpack.c.b16 %v177, %v176
    %v190 = vpack.c.b16 %v179, %v178
    %v191 = vpack.c.b16 %v181, %v180
    %v192 = vpack.c.b16 %v183, %v182
    %v193 = vpack.c.b16 %v185, %v184
    %202 = vmatpush.bf16.msra.mxu0 %v193
    %203 = vmatpush.bf16.msra.mxu0 %v192
    %204 = vmatpush.bf16.msra.mxu0 %v191
    %205 = vmatpush.bf16.msra.mxu0 %v190
    %206 = vmatpush.bf16.msra.mxu0 %v189
    %207 = vmatpush.bf16.msra.mxu0 %v188
    %208 = vmatpush.bf16.msra.mxu0 %v187
    %209 = vmatpush.bf16.msra.mxu0 %v186
    %210 = vmatmul.bf16.gmra.mxu0 %v150
    %v211 = vpop.f32.mrf.mxu0
    %v212 = vadd.f32 0.0, %v211
    %v213 = vpop.f32.mrf.mxu0
    %v214 = vadd.f32 0.0, %v213
    %215 = vmatmul.bf16.gmra.mxu0 %v151
    %v216 = vpop.f32.mrf.mxu0
    %v217 = vadd.f32 0.0, %v216
    %v218 = vpop.f32.mrf.mxu0
    %v219 = vadd.f32 0.0, %v218
    %220 = vdwg.mxu0
    %v221 = vpack.c.bf16 %v214, %v212
    %v222 = vpack.c.bf16 %v219, %v217
    %v227 = vunpack.c.l.b16 %v117
    %v228 = vunpack.c.l.b16 %v118
    %v229 = vunpack.c.l.b16 %v119
    %v230 = vunpack.c.l.b16 %v120
    %v231 = vpack.c.b16 %v228, %v227
    %v232 = vpack.c.b16 %v230, %v229
    %vm233 = vcmask 261120
    %v235 = vsel %vm233, %v231, 0
    %v238 = vsel %vm233, %v232, 0
    %240 = vmatpush.bf16.msra.mxu0 0
    %241 = vmatpush.bf16.msra.mxu0 0
    %242 = vmatpush.bf16.msra.mxu0 0
    %243 = vmatpush.bf16.msra.mxu0 0
    %244 = vmatpush.bf16.msra.mxu0 0
    %245 = vmatpush.bf16.msra.mxu0 0
    %246 = vmatpush.bf16.msra.mxu0 %v222
    %247 = vmatpush.bf16.msra.mxu0 %v221
    %248 = vmatmul.bf16.gmra.mxu0 %v235
    %v249 = vpop.f32.mrf.mxu0
    %v250 = vadd.f32 0.0, %v249
    %v251 = vpop.f32.mrf.mxu0
    %v252 = vadd.f32 0.0, %v251
    %253 = vmatmul.bf16.gmra.mxu0 %v238
    %v254 = vpop.f32.mrf.mxu0
    %v255 = vadd.f32 0.0, %v254
    %v256 = vpop.f32.mrf.mxu0
    %v257 = vadd.f32 0.0, %v256
    %258 = vdwg.mxu0
    %v259 = vadd.f32 %v250, %v252
    %v260 = vadd.f32 %v259, %v255
    %v261 = vadd.f32 %v260, %v257
    %v262 = vrot.slane %v261, 4
    %v263 = vadd.f32 %v261, %v262
    %v264 = vrot.slane %v263, 2
    %v265 = vadd.f32 %v263, %v264
    %v266 = vrot.slane %v265, 1
    %v267 = vadd.f32 %v265, %v266
    %v268 = vrcp.pop 32.0
    %v269 = vmul.f32 32.0, %v268
    %v270 = vsub.f32 1.0, %v269
    %v271 = vmul.f32 %v268, %v270
    %v272 = vadd.f32 %v268, %v271
    %vm273 = vweird.f32 %v268
    %v274 = vsel %vm273, %v268, %v272
    %v275 = vmul.f32 %v267, %v274
    %v276 = vsub.f32 %v250, %v275
    %v277 = vsub.f32 %v252, %v275
    %v278 = vsub.f32 %v255, %v275
    %v279 = vsub.f32 %v257, %v275
    %v280 = vmul.f32 %v276, %v276
    %v281 = vmul.f32 %v277, %v277
    %v282 = vmul.f32 %v278, %v278
    %v283 = vmul.f32 %v279, %v279
    %v284 = vadd.f32 %v280, %v281
    %v285 = vadd.f32 %v284, %v282
    %v286 = vadd.f32 %v285, %v283
    %v287 = vrot.slane %v286, 4
    %v288 = vadd.f32 %v286, %v287
    %v289 = vrot.slane %v288, 2
    %v290 = vadd.f32 %v288, %v289
    %v291 = vrot.slane %v290, 1
    %v292 = vadd.f32 %v290, %v291
    %v293 = vmul.f32 %v292, %v274
    %v294 = vadd.f32 %v293, 1e-05
    %v295 = vrsqrt.pop %v294
    %v296 = vmul.f32 %v295, %v294
    %v297 = vmul.f32 %v296, %v295
    %v298 = vmul.f32 0.5, %v297
    %v299 = vsub.f32 1.5, %v298
    %v300 = vmul.f32 %v295, %v299
    %vm301 = vweird.f32 %v294
    %vm302 = vweird.f32 %v295
    %vm303 = vmor %vm301, %vm302
    %v304 = vsel %vm303, %v295, %v300
    %v305 = vmul.f32 %v276, %v304
    %v306 = vmul.f32 %v277, %v304
    %v307 = vmul.f32 %v278, %v304
    %v308 = vmul.f32 %v279, %v304
    %v309 = vperm.slane %v125, 0
    %v310 = vmul.f32 %v305, %v309
    %v311 = vmul.f32 %v306, %v309
    %v312 = vmul.f32 %v307, %v309
    %v313 = vmul.f32 %v308, %v309
    %v314 = vperm.slane %v125, 1
    %v315 = vadd.f32 %v310, %v314
    %v316 = vadd.f32 %v311, %v314
    %v317 = vadd.f32 %v312, %v314
    %v318 = vadd.f32 %v313, %v314
    %v319 = vmax.f32 %v315, 0.0
    %v320 = vmax.f32 %v316, 0.0
    %v321 = vmax.f32 %v317, 0.0
    %v322 = vmax.f32 %v318, 0.0
    %v323 = vpack.c.bf16 %v320, %v319
    %v324 = vpack.c.bf16 %v322, %v321
    %v325 = vld [vmem:[#allocation8] sm:$0xf]
    %v326 = vld [vmem:[#allocation8 + $0x4] sm:$0xf]
    %v327 = vld [vmem:[#allocation8 + $0x8] sm:$0xf]
    %v328 = vld [vmem:[#allocation8 + $0xc] sm:$0xf]
    %v329 = vld [vmem:[#allocation8 + $0x10] sm:$0xf]
    %v330 = vld [vmem:[#allocation8 + $0x14] sm:$0xf]
    %v331 = vld [vmem:[#allocation8 + $0x18] sm:$0xf]
    %v332 = vld [vmem:[#allocation8 + $0x1c] sm:$0xf]
    %v333 = vld [vmem:[#allocation8 + $0x20] sm:$0xf]
    %v334 = vld [vmem:[#allocation8 + $0x24] sm:$0xf]
    %v335 = vld [vmem:[#allocation8 + $0x28] sm:$0xf]
    %v336 = vld [vmem:[#allocation8 + $0x2c] sm:$0xf]
    %v337 = vld [vmem:[#allocation8 + $0x30] sm:$0xf]
    %v338 = vld [vmem:[#allocation8 + $0x34] sm:$0xf]
    %v339 = vld [vmem:[#allocation8 + $0x38] sm:$0xf]
    %v340 = vld [vmem:[#allocation8 + $0x3c] sm:$0xf]
    %v357 = vunpack.c.l.b16 %v325
    %v358 = vunpack.c.l.b16 %v326
    %v359 = vunpack.c.l.b16 %v327
    %v360 = vunpack.c.l.b16 %v328
    %v361 = vunpack.c.l.b16 %v329
    %v362 = vunpack.c.l.b16 %v330
    %v363 = vunpack.c.l.b16 %v331
    %v364 = vunpack.c.l.b16 %v332
    %v365 = vunpack.c.l.b16 %v333
    %v366 = vunpack.c.l.b16 %v334
    %v367 = vunpack.c.l.b16 %v335
    %v368 = vunpack.c.l.b16 %v336
    %v369 = vunpack.c.l.b16 %v337
    %v370 = vunpack.c.l.b16 %v338
    %v371 = vunpack.c.l.b16 %v339
    %v372 = vunpack.c.l.b16 %v340
    %v373 = vpack.c.b16 %v358, %v357
    %v374 = vpack.c.b16 %v360, %v359
    %v375 = vpack.c.b16 %v362, %v361
    %v376 = vpack.c.b16 %v364, %v363
    %v377 = vpack.c.b16 %v366, %v365
    %v378 = vpack.c.b16 %v368, %v367
    %v379 = vpack.c.b16 %v370, %v369
    %v380 = vpack.c.b16 %v372, %v371
    %389 = vmatpush.bf16.msra.mxu0 %v380
    %390 = vmatpush.bf16.msra.mxu0 %v379
    %391 = vmatpush.bf16.msra.mxu0 %v378
    %392 = vmatpush.bf16.msra.mxu0 %v377
    %393 = vmatpush.bf16.msra.mxu0 %v376
    %394 = vmatpush.bf16.msra.mxu0 %v375
    %395 = vmatpush.bf16.msra.mxu0 %v374
    %396 = vmatpush.bf16.msra.mxu0 %v373
    %397 = vmatmul.bf16.gmra.mxu0 %v323
    %v398 = vpop.f32.mrf.mxu0
    %v399 = vadd.f32 0.0, %v398
    %v400 = vpop.f32.mrf.mxu0
    %v401 = vadd.f32 0.0, %v400
    %402 = vmatmul.bf16.gmra.mxu0 %v324
    %v403 = vpop.f32.mrf.mxu0
    %v404 = vadd.f32 0.0, %v403
    %v405 = vpop.f32.mrf.mxu0
    %v406 = vadd.f32 0.0, %v405
    %407 = vdwg.mxu0
    %v408 = vpack.c.bf16 %v401, %v399
    %v409 = vpack.c.bf16 %v406, %v404
    %410 = vmatpush.bf16.msra.mxu0 0
    %411 = vmatpush.bf16.msra.mxu0 0
    %412 = vmatpush.bf16.msra.mxu0 0
    %413 = vmatpush.bf16.msra.mxu0 0
    %414 = vmatpush.bf16.msra.mxu0 0
    %415 = vmatpush.bf16.msra.mxu0 0
    %416 = vmatpush.bf16.msra.mxu0 %v409
    %417 = vmatpush.bf16.msra.mxu0 %v408
    %418 = vmatmul.bf16.gmra.mxu0 %v235
    %v419 = vpop.f32.mrf.mxu0
    %v420 = vadd.f32 0.0, %v419
    %v421 = vpop.f32.mrf.mxu0
    %v422 = vadd.f32 0.0, %v421
    %423 = vmatmul.bf16.gmra.mxu0 %v238
    %v424 = vpop.f32.mrf.mxu0
    %v425 = vadd.f32 0.0, %v424
    %v426 = vpop.f32.mrf.mxu0
    %v427 = vadd.f32 0.0, %v426
    %428 = vdwg.mxu0
    %v429 = vadd.f32 %v420, %v422
    %v430 = vadd.f32 %v429, %v425
    %v431 = vadd.f32 %v430, %v427
    %v432 = vrot.slane %v431, 4
    %v433 = vadd.f32 %v431, %v432
    %v434 = vrot.slane %v433, 2
    %v435 = vadd.f32 %v433, %v434
    %v436 = vrot.slane %v435, 1
    %v437 = vadd.f32 %v435, %v436
    %v438 = vmul.f32 %v437, %v274
    %v439 = vsub.f32 %v420, %v438
    %v440 = vsub.f32 %v422, %v438
    %v441 = vsub.f32 %v425, %v438
    %v442 = vsub.f32 %v427, %v438
    %v443 = vmul.f32 %v439, %v439
    %v444 = vmul.f32 %v440, %v440
    %v445 = vmul.f32 %v441, %v441
    %v446 = vmul.f32 %v442, %v442
    %v447 = vadd.f32 %v443, %v444
    %v448 = vadd.f32 %v447, %v445
    %v449 = vadd.f32 %v448, %v446
    %v450 = vrot.slane %v449, 4
    %v451 = vadd.f32 %v449, %v450
    %v452 = vrot.slane %v451, 2
    %v453 = vadd.f32 %v451, %v452
    %v454 = vrot.slane %v453, 1
    %v455 = vadd.f32 %v453, %v454
    %v456 = vmul.f32 %v455, %v274
    %v457 = vadd.f32 %v456, 1e-05
    %v458 = vrsqrt.pop %v457
    %v459 = vmul.f32 %v458, %v457
    %v460 = vmul.f32 %v459, %v458
    %v461 = vmul.f32 0.5, %v460
    %v462 = vsub.f32 1.5, %v461
    %v463 = vmul.f32 %v458, %v462
    %vm464 = vweird.f32 %v457
    %vm465 = vweird.f32 %v458
    %vm466 = vmor %vm464, %vm465
    %v467 = vsel %vm466, %v458, %v463
    %v468 = vmul.f32 %v439, %v467
    %v469 = vmul.f32 %v440, %v467
    %v470 = vmul.f32 %v441, %v467
    %v471 = vmul.f32 %v442, %v467
    %v472 = vperm.slane %v125, 2
    %v473 = vmul.f32 %v468, %v472
    %v474 = vmul.f32 %v469, %v472
    %v475 = vmul.f32 %v470, %v472
    %v476 = vmul.f32 %v471, %v472
    %v477 = vperm.slane %v125, 3
    %v478 = vadd.f32 %v473, %v477
    %v479 = vadd.f32 %v474, %v477
    %v480 = vadd.f32 %v475, %v477
    %v481 = vadd.f32 %v476, %v477
    %v482 = vpack.c.bf16 %v479, %v478
    %v483 = vpack.c.bf16 %v481, %v480
    %v484 = vld [vmem:[#allocation10] sm:$0xf]
    %v485 = vld [vmem:[#allocation10 + $0x4] sm:$0xf]
    %v486 = vld [vmem:[#allocation10 + $0x8] sm:$0xf]
    %v487 = vld [vmem:[#allocation10 + $0xc] sm:$0xf]
    %v488 = vld [vmem:[#allocation10 + $0x10] sm:$0xf]
    %v489 = vld [vmem:[#allocation10 + $0x14] sm:$0xf]
    %v490 = vld [vmem:[#allocation10 + $0x18] sm:$0xf]
    %v491 = vld [vmem:[#allocation10 + $0x1c] sm:$0xf]
    %v492 = vld [vmem:[#allocation10 + $0x20] sm:$0xf]
    %v493 = vld [vmem:[#allocation10 + $0x24] sm:$0xf]
    %v494 = vld [vmem:[#allocation10 + $0x28] sm:$0xf]
    %v495 = vld [vmem:[#allocation10 + $0x2c] sm:$0xf]
    %v496 = vld [vmem:[#allocation10 + $0x30] sm:$0xf]
    %v497 = vld [vmem:[#allocation10 + $0x34] sm:$0xf]
    %v498 = vld [vmem:[#allocation10 + $0x38] sm:$0xf]
    %v499 = vld [vmem:[#allocation10 + $0x3c] sm:$0xf]
    %v500 = vperm.slane %v125, 4
    %v517 = vunpack.c.l.b16 %v484
    %v518 = vunpack.c.l.b16 %v485
    %v519 = vunpack.c.l.b16 %v486
    %v520 = vunpack.c.l.b16 %v487
    %v521 = vunpack.c.l.b16 %v488
    %v522 = vunpack.c.l.b16 %v489
    %v523 = vunpack.c.l.b16 %v490
    %v524 = vunpack.c.l.b16 %v491
    %v525 = vunpack.c.l.b16 %v492
    %v526 = vunpack.c.l.b16 %v493
    %v527 = vunpack.c.l.b16 %v494
    %v528 = vunpack.c.l.b16 %v495
    %v529 = vunpack.c.l.b16 %v496
    %v530 = vunpack.c.l.b16 %v497
    %v531 = vunpack.c.l.b16 %v498
    %v532 = vunpack.c.l.b16 %v499
    %v533 = vpack.c.b16 %v518, %v517
    %v534 = vpack.c.b16 %v520, %v519
    %v535 = vpack.c.b16 %v522, %v521
    %v536 = vpack.c.b16 %v524, %v523
    %v537 = vpack.c.b16 %v526, %v525
    %v538 = vpack.c.b16 %v528, %v527
    %v539 = vpack.c.b16 %v530, %v529
    %v540 = vpack.c.b16 %v532, %v531
    %549 = vmatpush.bf16.msra.mxu0 %v540
    %550 = vmatpush.bf16.msra.mxu0 %v539
    %551 = vmatpush.bf16.msra.mxu0 %v538
    %552 = vmatpush.bf16.msra.mxu0 %v537
    %553 = vmatpush.bf16.msra.mxu0 %v536
    %554 = vmatpush.bf16.msra.mxu0 %v535
    %555 = vmatpush.bf16.msra.mxu0 %v534
    %556 = vmatpush.bf16.msra.mxu0 %v533
    %557 = vmatmul.bf16.gmra.mxu0 %v482
    %v558 = vpop.f32.mrf.mxu0
    %v559 = vadd.f32 %v500, %v558
    %v560 = vpop.f32.mrf.mxu0
    %v561 = vadd.f32 %v500, %v560
    %562 = vmatmul.bf16.gmra.mxu0 %v483
    %v563 = vpop.f32.mrf.mxu0
    %v564 = vadd.f32 %v500, %v563
    %v565 = vpop.f32.mrf.mxu0
    %v566 = vadd.f32 %v500, %v565
    %567 = vdwg.mxu0
    %568 = vst [vmem:[#allocation13] sm:$0xff] %v559
    %569 = vst [vmem:[#allocation13 + $0x8] sm:$0xff] %v561
    %570 = vst [vmem:[#allocation13 + $0x10] sm:$0xff] %v564
    %571 = vst [vmem:[#allocation13 + $0x18] sm:$0xff] %v566
    // Predicated region
    $region50: #{tpu_custom_call.1} parent=1 // pred_check
      _
    $region51: #{tpu_custom_call.1} parent=1 // pred_check_branch
      %573 = sbr.rel (0) target = $region53
    $region52: #{tpu_custom_call.1} parent=1 // pred_region
      %575 = vsyncadd [#allocation4], 0
      %s576 = sshll.u32 [#allocation13], 4
      %s577 = int_to_ptr.vmem [resolvable:$true] %s576
      %s578 = sshll.u32 %s6, 4
      %s579 = int_to_ptr.hbm [resolvable:$true] %s578
      %584 = dma.vmem_to_hbm [thread:$0]  %s577, 512, %s579, [#allocation4], 128, 128, 8
    $region53: #{tpu_custom_call.1} parent=1 // pred_fallthru
      _
    // Predicated region
    $region54: #{tpu_custom_call.1} parent=1 // pred_check
      _
    $region55: #{tpu_custom_call.1} parent=1 // pred_check_branch
      %586 = sbr.rel (0) target = $region57
    $region56: #{tpu_custom_call.1} parent=1 // pred_region
      %588 = dma.done [#allocation4], 512
    $region57: #{tpu_custom_call.1} parent=1 // pred_fallthru
      _
    %589 = vsyncpa [#allocation3], 1
    %590 = vsyncpa [#allocation6], 1
    %591 = vsyncpa [#allocation9], 1
    %592 = vsyncpa [#allocation12], 1
    %593 = vsyncpa [#allocation4], 1

</llo_original>
